<compile_context>
chip_gen: v6e
topology: v6e:2x2x1
jax: 0.10.0
libtpu: 0.0.40
codegen_flags: <defaults>
</compile_context>

<pallas_src>
import jax
import jax.numpy as jnp
from jax import lax
from jax.experimental import pallas as pl
from jax.experimental.pallas import tpu as pltpu


# ----------------------------------------------------------------------------
# Kernel: one destination-node tile per grid step.
# ----------------------------------------------------------------------------
def egret_kernel(ex_ref, a_ref, mask_ref, z_ref, q_ref, s_ref,
                 wfce_ref, bfce_ref, h_ref, alpha_ref):
    """Refs per dst tile (T = tile_dst, Np = padded node count):
      ex_ref   [T, E, Np] bf16 : edge features, lane-dense [dst, e, src]
      a_ref    [T, Np]    f32  : pre-assembled attention logits (pre-activation)
      mask_ref [1, Np]    f32  : 0 for real sources, -1e30 for padded sources
      z_ref    [Np, D]    bf16 : fc(x) for every (source) node
      q_ref    [Np, D]    f32  : query(z) for every (source) node
      s_ref    [T, D]     f32  : support(z) for this dst tile
      wfce_ref [E, D] / bfce_ref [1, D] : fc_edge weights (f32)
    """
    f32, bf16 = jnp.float32, jnp.bfloat16

    # --- edge-dependent attention: leaky_relu(0.2) -> masked softmax over src
    a = a_ref[...]
    e = jnp.where(a > 0, a, 0.2 * a) + mask_ref[...]
    p = jnp.exp(e - jnp.max(e, axis=1, keepdims=True))
    # exact reciprocal (only T divides): alpha is returned as probabilities
    alpha = p * (1.0 / jnp.sum(p, axis=1, keepdims=True))                 # [T, Np]
    alpha_ref[...] = alpha

    # --- similar-node branch: es[dst, src] = support(z_dst) . query(z_src)
    es = lax.dot_general(s_ref[...], q_ref[...], (((1,), (1,)), ((), ())),
                         preferred_element_type=f32) + mask_ref[...]      # [T, Np]
    ps = jnp.exp(es - jnp.max(es, axis=1, keepdims=True))
    similar = ps * pl.reciprocal(jnp.sum(ps, axis=1, keepdims=True), approx=True)

    # --- fused message reduce: one MXU call for both alpha@z and similar@z
    t = alpha.shape[0]
    w = jnp.concatenate([alpha.astype(bf16), similar.astype(bf16)], axis=0)  # [2T, Np]
    hh = jnp.dot(w, z_ref[...], preferred_element_type=f32)                  # [2T, D]

    # --- edge aggregation: sum_src alpha * fc_edge(ex) == (sum_src alpha*ex) @ W + b
    # lane-axis (src) reduce on the VPU/XLU with f32 accumulation.
    aex = jnp.sum(ex_ref[...].astype(f32) * alpha[:, None, :], axis=-1)      # [T, E]
    h_edge = jnp.dot(aex, wfce_ref[...], preferred_element_type=f32) + bfce_ref[...]

    h_ref[...] = hh[:t] * hh[t:] + h_edge


# ----------------------------------------------------------------------------
# Wrapper-side helpers.
# ----------------------------------------------------------------------------
def _round_up(x, m):
    return ((x + m - 1) // m) * m


def _choose_tiling(n, edge_dim):
    """Return (n_pad, tile_dst).  Tiles are multiples of 8; aim for >= 2 grid
    steps (v7x megacore) and bound the streamed ex tile + its f32 reduce temp."""
    n8 = _round_up(max(n, 8), 8)
    if n8 <= 16:
        return n8, n8
    budget = 24 * 1024 * 1024                     # 2x bf16 ex tile + f32 temp, per tile
    max_tile = (budget // (8 * edge_dim * n8)) // 8 * 8
    max_tile = max(8, min(128, max_tile))
    tile = min(max_tile, _round_up((n8 + 1) // 2, 8))   # at least 2 tiles when possible
    n_pad = _round_up(n, tile)
    return n_pad, tile


def _vmem_limit_bytes():
    cap = None
    try:
        cap = getattr(pltpu.get_tpu_info(), "vmem_capacity_bytes", None)
    except Exception:
        cap = None
    if not cap:
        cap = 64 * 1024 * 1024                    # conservative (v7x per-core VMEM)
    return int(min(max(cap * 3 // 4, 32 * 1024 * 1024), 100 * 1024 * 1024))


def egret_forward(x, ex3, params):
    """x: [N, in_dim] node features; ex3: [N, N, edge_dim] with ex3[dst, src, :]."""
    N = x.shape[0]
    E = ex3.shape[-1]
    D = params["wfc"].shape[1]
    f32, bf16 = jnp.float32, jnp.bfloat16

    n_pad, tile = _choose_tiling(N, E)
    pad = n_pad - N
    grid = (n_pad // tile,)

    # ---- grid-invariant node transforms, hoisted out of the kernel (XLA, once) ----
    z = x @ params["wfc"] + params["bfc"]                       # fc(x)       [N, D]
    q = z @ params["wq"] + params["bq"]                         # query(z)    [N, D]
    s = z @ params["ws"] + params["bs"]                         # support(z)  [N, D]

    # attn_fc(cat([z_src, z_dst, fc_edge_att(ex)])) folded into
    #   z_src.w_src + z_dst.w_dst + ex.(W_fce_att @ w_edge) + (b_att + b_fce_att.w_edge)
    w_ef = params["wfceatt"] @ params["wa_edge"][0]                              # [E]
    const = params["bfceatt"][0] @ params["wa_edge"][0] + params["ba"][0, 0]     # scalar
    src_row = (z @ params["wa_src"][0]).reshape(1, N)
    dst_col = (z @ params["wa_dst"][0] + const).reshape(N, 1)
    edge_term = (ex3.reshape(N * N, E) @ w_ef).reshape(N, N)
    a_pre = (edge_term + dst_col + src_row).astype(f32)         # logits [N, N]

    # ---- pad to a tile multiple; padded sources are masked out of both softmaxes ----
    if pad:
        z = jnp.pad(z, ((0, pad), (0, 0)))
        q = jnp.pad(q, ((0, pad), (0, 0)))
        s = jnp.pad(s, ((0, pad), (0, 0)))
        a_pre = jnp.pad(a_pre, ((0, pad), (0, pad)))
    mask_row = jnp.where(jnp.arange(n_pad) < N, 0.0, -1e30).reshape(1, n_pad).astype(f32)

    # ex streamed in bf16 with a lane-dense [dst, E, src] layout (src on the lane axis)
    ex_t = jnp.transpose(ex3, (0, 2, 1)).astype(bf16)           # [N, E, N]
    if pad:
        ex_t = jnp.pad(ex_t, ((0, pad), (0, 0), (0, pad)))

    def full_spec(shape):
        nd = len(shape)
        return pl.BlockSpec(shape, lambda i, _nd=nd: (0,) * _nd)

    h_pad, alpha_pad = pl.pallas_call(
        egret_kernel,
        grid=grid,
        out_shape=(jax.ShapeDtypeStruct((n_pad, D), f32),
                   jax.ShapeDtypeStruct((n_pad, n_pad), f32)),
        in_specs=[
            pl.BlockSpec((tile, E, n_pad), lambda i: (i, 0, 0)),   # ex tile (bf16)
            pl.BlockSpec((tile, n_pad), lambda i: (i, 0)),         # attention logits
            full_spec((1, n_pad)),                                 # src pad mask
            full_spec((n_pad, D)),                                 # z   (bf16)
            full_spec((n_pad, D)),                                 # q   (f32)
            pl.BlockSpec((tile, D), lambda i: (i, 0)),             # s tile (f32)
            full_spec((E, D)),                                     # wfce
            full_spec((1, D)),                                     # bfce
        ],
        out_specs=(pl.BlockSpec((tile, D), lambda i: (i, 0)),
                   pl.BlockSpec((tile, n_pad), lambda i: (i, 0))),
        compiler_params=pltpu.CompilerParams(
            dimension_semantics=("parallel",),
            vmem_limit_bytes=_vmem_limit_bytes()),
    )(ex_t, a_pre, mask_row, z.astype(bf16), q.astype(f32), s.astype(f32),
      params["wfce"], params["bfce"])

    h = h_pad[:N]
    alpha = alpha_pad[:N, :N]
    # torch returns alpha shaped [N, mailbox, 1]
    return h, alpha.reshape(N, N, 1)


# ----------------------------------------------------------------------------
# Pure-jnp f32 reference of the original forward pass (for verification).
# ----------------------------------------------------------------------------
def egret_reference(x, ex3, params):
    N = x.shape[0]
    E = ex3.shape[-1]
    z = x @ params["wfc"] + params["bfc"]
    ex = ex3.reshape(N * N, E)
    ex_t = ex @ params["wfceatt"] + params["bfceatt"]
    ez = (ex @ params["wfce"] + params["bfce"]).reshape(N, N, -1)
    src_t = z @ params["wa_src"][0]
    dst_t = z @ params["wa_dst"][0]
    edge_t = (ex_t @ params["wa_edge"][0]).reshape(N, N)
    a = dst_t[:, None] + src_t[None, :] + edge_t + params["ba"][0, 0]
    e = jnp.where(a > 0, a, 0.2 * a)
    alpha = jax.nn.softmax(e, axis=1)
    q = z @ params["wq"] + params["bq"]
    s = z @ params["ws"] + params["bs"]
    similar = jax.nn.softmax(s @ q.T, axis=1)
    h = (alpha @ z) * (similar @ z) + jnp.sum(alpha[:, :, None] * ez, axis=1)
    return h, alpha.reshape(N, N, 1)


def init_params(key, in_dim, out_dim, edge_dim):
    gain = jnp.sqrt(2.0)  # nn.init.calculate_gain('relu')

    def xavier(k, fan_in, fan_out, shape):
        std = gain * jnp.sqrt(2.0 / (fan_in + fan_out))
        return (std * jax.random.normal(k, shape)).astype(jnp.float32)

    ks = jax.random.split(key, 16)
    att_in = 2 * out_dim + edge_dim
    p = {
        # fc: Linear(in_dim, out_dim)   (weights stored transposed: [in, out])
        "wfc": xavier(ks[0], in_dim, out_dim, (in_dim, out_dim)),
        "bfc": (0.05 * jax.random.normal(ks[1], (1, out_dim))).astype(jnp.float32),
        # attn_fc: Linear(2*out+edge, 1) split into src / dst / edge column blocks
        "wa_src": xavier(ks[2], att_in, 1, (1, out_dim)),
        "wa_dst": xavier(ks[3], att_in, 1, (1, out_dim)),
        "wa_edge": xavier(ks[4], att_in, 1, (1, edge_dim)),
        "ba": (0.05 * jax.random.normal(ks[5], (1, 1))).astype(jnp.float32),
        # fc_edge: Linear(edge_dim, out_dim)
        "wfce": xavier(ks[6], edge_dim, out_dim, (edge_dim, out_dim)),
        "bfce": (0.05 * jax.random.normal(ks[7], (1, out_dim))).astype(jnp.float32),
        # fc_edge_for_att_calc: Linear(edge_dim, edge_dim)
        "wfceatt": xavier(ks[8], edge_dim, edge_dim, (edge_dim, edge_dim)),
        "bfceatt": (0.05 * jax.random.normal(ks[9], (1, edge_dim))).astype(jnp.float32),
        # query / support: Conv1d(out, out, 1)
        "wq": xavier(ks[10], out_dim, out_dim, (out_dim, out_dim)),
        "bq": (0.05 * jax.random.normal(ks[11], (1, out_dim))).astype(jnp.float32),
        "ws": xavier(ks[12], out_dim, out_dim, (out_dim, out_dim)),
        "bs": (0.05 * jax.random.normal(ks[13], (1, out_dim))).astype(jnp.float32),
    }
    # TODO(synk): self.g / self.fi sub-modules exist in __init__ but are unused
    # in the forward path, so they are intentionally not materialized.
    return p


if __name__ == "__main__":
    in_dim, out_dim, edge_dim = 32, 32, 16

    def run_case(n, key):
        k_x, k_e, k_p = jax.random.split(key, 3)
        x = jax.random.normal(k_x, (n, in_dim), dtype=jnp.float32)
        ex3 = jax.random.normal(k_e, (n, n, edge_dim), dtype=jnp.float32)  # ex3[dst, src, :]
        params = init_params(k_p, in_dim, out_dim, edge_dim)

        h, alpha = egret_forward(x, ex3, params)
        h = jax.block_until_ready(h)
        alpha = jax.block_until_ready(alpha)

        h_ref, alpha_ref = egret_reference(x, ex3, params)
        assert h.shape == (n, out_dim) and alpha.shape == (n, n, 1)
        # alpha path is f32 with an exact reciprocal; h uses bf16 MXU operands
        # (and bf16 ex) so it gets a slightly looser absolute tolerance.
        assert jnp.allclose(alpha, alpha_ref, rtol=2e-2, atol=2e-2), \
            float(jnp.max(jnp.abs(alpha - alpha_ref)))
        assert jnp.allclose(h, h_ref, rtol=2e-2, atol=3e-2), \
            float(jnp.max(jnp.abs(h - h_ref)))

    # small fully-connected graph (single dst tile)
    run_case(8, jax.random.PRNGKey(0))
    # ragged N: exercises source padding/masking and a multi-tile "parallel" grid
    run_case(20, jax.random.PRNGKey(1))

    print("KERNEL_OK")
</pallas_src>

<mosaic_0001>
module attributes {stable_mosaic.version = 11 : i64} {
  func.func @egret_kernel(%arg0: i32, %arg1: memref<8x16x8xbf16, #tpu.memory_space<vmem>>, %arg2: memref<8x8xf32, #tpu.memory_space<vmem>>, %arg3: memref<1x8xf32, #tpu.memory_space<vmem>>, %arg4: memref<8x32xbf16, #tpu.memory_space<vmem>>, %arg5: memref<8x32xf32, #tpu.memory_space<vmem>>, %arg6: memref<8x32xf32, #tpu.memory_space<vmem>>, %arg7: memref<16x32xf32, #tpu.memory_space<vmem>>, %arg8: memref<1x32xf32, #tpu.memory_space<vmem>>, %arg9: memref<8x32xf32, #tpu.memory_space<vmem>>, %arg10: memref<8x8xf32, #tpu.memory_space<vmem>>) attributes {dimension_semantics = [#tpu.dimension_semantics<parallel>], iteration_bounds = array<i64: 1>, scalar_prefetch = 0 : i64, scratch_operands = 0 : i64, tpu.core_type = #tpu.core_type<tc>, window_params = [{transform_indices = @transform_0, window_bounds = array<i64: 8, 16, 8>}, {transform_indices = @transform_1, window_bounds = array<i64: 8, 8>}, {pipeline_mode = #tpu.pipeline_mode<synchronous>, transform_indices = @transform_2, window_bounds = array<i64: 1, 8>}, {pipeline_mode = #tpu.pipeline_mode<synchronous>, transform_indices = @transform_3, window_bounds = array<i64: 8, 32>}, {pipeline_mode = #tpu.pipeline_mode<synchronous>, transform_indices = @transform_4, window_bounds = array<i64: 8, 32>}, {transform_indices = @transform_5, window_bounds = array<i64: 8, 32>}, {pipeline_mode = #tpu.pipeline_mode<synchronous>, transform_indices = @transform_6, window_bounds = array<i64: 16, 32>}, {pipeline_mode = #tpu.pipeline_mode<synchronous>, transform_indices = @transform_7, window_bounds = array<i64: 1, 32>}, {transform_indices = @transform_8, window_bounds = array<i64: 8, 32>}, {transform_indices = @transform_9, window_bounds = array<i64: 8, 8>}]} {
    %c0 = arith.constant 0 : index
    %c0_0 = arith.constant 0 : index
    %0 = vector.load %arg2[%c0, %c0_0] : memref<8x8xf32, #tpu.memory_space<vmem>>, vector<8x8xf32>
    %cst = arith.constant 0.000000e+00 : f32
    %1 = vector.broadcast %cst : f32 to vector<8x8xf32>
    %2 = arith.cmpf ogt, %0, %1 : vector<8x8xf32>
    %cst_1 = arith.constant 2.000000e-01 : f32
    %3 = vector.broadcast %cst_1 : f32 to vector<8x8xf32>
    %4 = arith.mulf %3, %0 : vector<8x8xf32>
    %5 = arith.select %2, %0, %4 : vector<8x8xi1>, vector<8x8xf32>
    %c0_2 = arith.constant 0 : index
    %c0_3 = arith.constant 0 : index
    %6 = vector.load %arg3[%c0_2, %c0_3] : memref<1x8xf32, #tpu.memory_space<vmem>>, vector<1x8xf32>
    %7 = vector.broadcast %6 : vector<1x8xf32> to vector<8x8xf32>
    %8 = arith.addf %5, %7 : vector<8x8xf32>
    %cst_4 = arith.constant dense<0xFF800000> : vector<8xf32>
    %9 = vector.multi_reduction <maximumf>, %8, %cst_4 [1] : vector<8x8xf32> to vector<8xf32>
    %10 = vector.shape_cast %9 : vector<8xf32> to vector<8x1xf32>
    %11 = vector.broadcast %10 : vector<8x1xf32> to vector<8x8xf32>
    %12 = arith.subf %8, %11 : vector<8x8xf32>
    %13 = math.exp %12 : vector<8x8xf32>
    %cst_5 = arith.constant dense<0.000000e+00> : vector<8xf32>
    %14 = vector.multi_reduction <add>, %13, %cst_5 [1] : vector<8x8xf32> to vector<8xf32>
    %15 = vector.shape_cast %14 : vector<8xf32> to vector<8x1xf32>
    %cst_6 = arith.constant 1.000000e+00 : f32
    %16 = vector.broadcast %cst_6 : f32 to vector<8x1xf32>
    %17 = arith.divf %16, %15 : vector<8x1xf32>
    %18 = vector.broadcast %17 : vector<8x1xf32> to vector<8x8xf32>
    %19 = arith.mulf %13, %18 : vector<8x8xf32>
    %c0_7 = arith.constant 0 : index
    %c0_8 = arith.constant 0 : index
    %20 = vector.load %arg10[%c0_7, %c0_8] : memref<8x8xf32, #tpu.memory_space<vmem>>, vector<8x8xf32>
    tpu.vector_store %arg10[%c0_7, %c0_8], %19 {strides = array<i32>} : memref<8x8xf32, #tpu.memory_space<vmem>>, vector<8x8xf32>,
    %c0_9 = arith.constant 0 : index
    %c0_10 = arith.constant 0 : index
    %21 = vector.load %arg6[%c0_9, %c0_10] : memref<8x32xf32, #tpu.memory_space<vmem>>, vector<8x32xf32>
    %c0_11 = arith.constant 0 : index
    %c0_12 = arith.constant 0 : index
    %22 = vector.load %arg5[%c0_11, %c0_12] : memref<8x32xf32, #tpu.memory_space<vmem>>, vector<8x32xf32>
    %cst_13 = arith.constant dense<0.000000e+00> : vector<8x8xf32>
    %23 = tpu.matmul %21, %22, %cst_13 {dimension_numbers = #tpu.dot_dimension_numbers<[1], [1], [0], [0], [0, 0, 1, 0], [], []>} : vector<8x32xf32>, vector<8x32xf32>, vector<8x8xf32> -> vector<8x8xf32>
    %c0_14 = arith.constant 0 : index
    %c0_15 = arith.constant 0 : index
    %24 = vector.load %arg3[%c0_14, %c0_15] : memref<1x8xf32, #tpu.memory_space<vmem>>, vector<1x8xf32>
    %25 = vector.broadcast %24 : vector<1x8xf32> to vector<8x8xf32>
    %26 = arith.addf %23, %25 : vector<8x8xf32>
    %cst_16 = arith.constant dense<0xFF800000> : vector<8xf32>
    %27 = vector.multi_reduction <maximumf>, %26, %cst_16 [1] : vector<8x8xf32> to vector<8xf32>
    %28 = vector.shape_cast %27 : vector<8xf32> to vector<8x1xf32>
    %29 = vector.broadcast %28 : vector<8x1xf32> to vector<8x8xf32>
    %30 = arith.subf %26, %29 : vector<8x8xf32>
    %31 = math.exp %30 : vector<8x8xf32>
    %cst_17 = arith.constant dense<0.000000e+00> : vector<8xf32>
    %32 = vector.multi_reduction <add>, %31, %cst_17 [1] : vector<8x8xf32> to vector<8xf32>
    %33 = vector.shape_cast %32 : vector<8xf32> to vector<8x1xf32>
    %34 = tpu.reciprocal %33 {approx = true} : vector<8x1xf32> -> vector<8x1xf32>
    %35 = vector.broadcast %34 : vector<8x1xf32> to vector<8x8xf32>
    %36 = arith.mulf %31, %35 : vector<8x8xf32>
    %37 = arith.truncf %19 : vector<8x8xf32> to vector<8x8xbf16>
    %38 = arith.truncf %36 : vector<8x8xf32> to vector<8x8xbf16>
    %39 = tpu.concatenate %37, %38 in 0 : vector<8x8xbf16>, vector<8x8xbf16> -> vector<16x8xbf16>
    %c0_18 = arith.constant 0 : index
    %c0_19 = arith.constant 0 : index
    %40 = vector.load %arg4[%c0_18, %c0_19] : memref<8x32xbf16, #tpu.memory_space<vmem>>, vector<8x32xbf16>
    %cst_20 = arith.constant dense<0.000000e+00> : vector<16x32xf32>
    %41 = tpu.matmul %39, %40, %cst_20 {dimension_numbers = #tpu.dot_dimension_numbers<[1], [0], [0], [1], [0, 0, 1, 1], [], []>} : vector<16x8xbf16>, vector<8x32xbf16>, vector<16x32xf32> -> vector<16x32xf32>
    %c0_21 = arith.constant 0 : index
    %c0_22 = arith.constant 0 : index
    %c0_23 = arith.constant 0 : index
    %42 = vector.load %arg1[%c0_21, %c0_22, %c0_23] : memref<8x16x8xbf16, #tpu.memory_space<vmem>>, vector<8x16x8xbf16>
    %43 = arith.extf %42 : vector<8x16x8xbf16> to vector<8x16x8xf32>
    %44 = vector.shape_cast %19 : vector<8x8xf32> to vector<8x1x8xf32>
    %45 = vector.broadcast %44 : vector<8x1x8xf32> to vector<8x16x8xf32>
    %46 = arith.mulf %43, %45 : vector<8x16x8xf32>
    %cst_24 = arith.constant dense<0.000000e+00> : vector<8x16xf32>
    %47 = vector.multi_reduction <add>, %46, %cst_24 [2] : vector<8x16x8xf32> to vector<8x16xf32>
    %c0_25 = arith.constant 0 : index
    %c0_26 = arith.constant 0 : index
    %48 = vector.load %arg7[%c0_25, %c0_26] : memref<16x32xf32, #tpu.memory_space<vmem>>, vector<16x32xf32>
    %cst_27 = arith.constant dense<0.000000e+00> : vector<8x32xf32>
    %49 = tpu.matmul %47, %48, %cst_27 {dimension_numbers = #tpu.dot_dimension_numbers<[1], [0], [0], [1], [0, 0, 1, 1], [], []>} : vector<8x16xf32>, vector<16x32xf32>, vector<8x32xf32> -> vector<8x32xf32>
    %c0_28 = arith.constant 0 : index
    %c0_29 = arith.constant 0 : index
    %50 = vector.load %arg8[%c0_28, %c0_29] : memref<1x32xf32, #tpu.memory_space<vmem>>, vector<1x32xf32>
    %51 = vector.broadcast %50 : vector<1x32xf32> to vector<8x32xf32>
    %52 = arith.addf %49, %51 : vector<8x32xf32>
    %53 = vector.extract_strided_slice %41 {offsets = [0, 0], sizes = [8, 32], strides = [1, 1]} : vector<16x32xf32> to vector<8x32xf32>
    %54 = vector.extract_strided_slice %41 {offsets = [8, 0], sizes = [8, 32], strides = [1, 1]} : vector<16x32xf32> to vector<8x32xf32>
    %55 = arith.mulf %53, %54 : vector<8x32xf32>
    %56 = arith.addf %55, %52 : vector<8x32xf32>
    %c0_30 = arith.constant 0 : index
    %c0_31 = arith.constant 0 : index
    %57 = vector.load %arg9[%c0_30, %c0_31] : memref<8x32xf32, #tpu.memory_space<vmem>>, vector<8x32xf32>
    tpu.vector_store %arg9[%c0_30, %c0_31], %56 {strides = array<i32>} : memref<8x32xf32, #tpu.memory_space<vmem>>, vector<8x32xf32>,
    return
  }
  func.func @transform_0(%arg0: i32) -> (i32, i32, i32) {
    %c0_i32 = arith.constant 0 : i32
    %c0_i32_0 = arith.constant 0 : i32
    %c0_i32_1 = arith.constant 0 : i32
    return %arg0, %c0_i32, %c0_i32_0 : i32, i32, i32
  }
  func.func @transform_1(%arg0: i32) -> (i32, i32) {
    %c0_i32 = arith.constant 0 : i32
    %c0_i32_0 = arith.constant 0 : i32
    return %arg0, %c0_i32 : i32, i32
  }
  func.func @transform_2(%arg0: i32) -> (i32, i32) {
    %c0_i32 = arith.constant 0 : i32
    %c0_i32_0 = arith.constant 0 : i32
    %c0_i32_1 = arith.constant 0 : i32
    return %c0_i32, %c0_i32_0 : i32, i32
  }
  func.func @transform_3(%arg0: i32) -> (i32, i32) {
    %c0_i32 = arith.constant 0 : i32
    %c0_i32_0 = arith.constant 0 : i32
    %c0_i32_1 = arith.constant 0 : i32
    return %c0_i32, %c0_i32_0 : i32, i32
  }
  func.func @transform_4(%arg0: i32) -> (i32, i32) {
    %c0_i32 = arith.constant 0 : i32
    %c0_i32_0 = arith.constant 0 : i32
    %c0_i32_1 = arith.constant 0 : i32
    return %c0_i32, %c0_i32_0 : i32, i32
  }
  func.func @transform_5(%arg0: i32) -> (i32, i32) {
    %c0_i32 = arith.constant 0 : i32
    %c0_i32_0 = arith.constant 0 : i32
    return %arg0, %c0_i32 : i32, i32
  }
  func.func @transform_6(%arg0: i32) -> (i32, i32) {
    %c0_i32 = arith.constant 0 : i32
    %c0_i32_0 = arith.constant 0 : i32
    %c0_i32_1 = arith.constant 0 : i32
    return %c0_i32, %c0_i32_0 : i32, i32
  }
  func.func @transform_7(%arg0: i32) -> (i32, i32) {
    %c0_i32 = arith.constant 0 : i32
    %c0_i32_0 = arith.constant 0 : i32
    %c0_i32_1 = arith.constant 0 : i32
    return %c0_i32, %c0_i32_0 : i32, i32
  }
  func.func @transform_8(%arg0: i32) -> (i32, i32) {
    %c0_i32 = arith.constant 0 : i32
    %c0_i32_0 = arith.constant 0 : i32
    return %arg0, %c0_i32 : i32, i32
  }
  func.func @transform_9(%arg0: i32) -> (i32, i32) {
    %c0_i32 = arith.constant 0 : i32
    %c0_i32_0 = arith.constant 0 : i32
    return %arg0, %c0_i32 : i32, i32
  }
}

</mosaic_0001>

<llo_original>
// kernel: tpu_custom_call.1
$region0: #{tpu_custom_call.1}
  #allocation0 [shape = 'u32[]', space=smem, size = 0x4, offset = 0x4, fixed_abs, tag = 'smem constant byte address 0x4 - core index']
  #allocation1 [shape = 'u32[144,128]{1,0:T(1,128)}', space=vmem, size = 0x12000, scoped, tag = 'internal scratch']
  %s0 = inlined_call_operand.vmem [shape: bf16[8,16,8], index: 0, kind: input, shape index: {}]
  %s1 = inlined_call_operand.vmem [shape: f32[8,8], index: 1, kind: input, shape index: {}]
  %s2 = inlined_call_operand.vmem [shape: f32[1,8], index: 2, kind: input, shape index: {}]
  %s3 = inlined_call_operand.vmem [shape: bf16[8,32], index: 3, kind: input, shape index: {}]
  %s4 = inlined_call_operand.vmem [shape: f32[8,32], index: 4, kind: input, shape index: {}]
  %s5 = inlined_call_operand.vmem [shape: f32[8,32], index: 5, kind: input, shape index: {}]
  %s6 = inlined_call_operand.vmem [shape: f32[16,32], index: 6, kind: input, shape index: {}]
  %s7 = inlined_call_operand.vmem [shape: f32[1,32], index: 7, kind: input, shape index: {}]
  %s8 = inlined_call_operand.hbm [shape: f32[8,32], index: 8, kind: output, shape index: {0}]
  %s9 = inlined_call_operand.hbm [shape: f32[8,8], index: 9, kind: output, shape index: {1}]
  %10 = xla_tuple %s8, %s9
  %s11 = sld [smem:[#allocation0]]
  $region50: #{tpu_custom_call.1} parent=0
    _
  %s13 = ssub.s32 1, %s11
  %s14 = scalar_select 0, %s13, %s11
  $region1: #{tpu_custom_call.1} parent=0
    #allocation2 [shape = 'u8[4096]{0}', space=vmem, size = 0x1000, scoped, tag = 'output window, operand 0, single buffered']
    #allocation3 [shape = 's32[1]{0}', space=sflag, size = 0x4, scoped, tag = 'scoped memory for tpu_custom_call.1']
    #allocation4 [shape = 'u8[4096]{0}', space=vmem, size = 0x1000, scoped, tag = 'output window, operand 1, single buffered']
    #allocation5 [shape = 's32[1]{0}', space=sflag, size = 0x4, scoped, tag = 'scoped memory for tpu_custom_call.1']
    %15 = vsyncpa [#allocation3], 0
    %16 = vsyncpa [#allocation5], 0
    // Predicated region
    $region2: #{tpu_custom_call.1} parent=1 // pred_check
      _
    $region3: #{tpu_custom_call.1} parent=1 // pred_check_branch
      %18 = sbr.rel (0) target = $region5
    $region4: #{tpu_custom_call.1} parent=1 // pred_region
      _
    $region5: #{tpu_custom_call.1} parent=1 // pred_fallthru
      _
    // Predicated region
    $region6: #{tpu_custom_call.1} parent=1 // pred_check
      _
    $region7: #{tpu_custom_call.1} parent=1 // pred_check_branch
      %20 = sbr.rel (0) target = $region9
    $region8: #{tpu_custom_call.1} parent=1 // pred_region
      _
    $region9: #{tpu_custom_call.1} parent=1 // pred_fallthru
      _
    // Predicated region
    $region10: #{tpu_custom_call.1} parent=1 // pred_check
      _
    $region11: #{tpu_custom_call.1} parent=1 // pred_check_branch
      %22 = sbr.rel (0) target = $region13
    $region12: #{tpu_custom_call.1} parent=1 // pred_region
      _
    $region13: #{tpu_custom_call.1} parent=1 // pred_fallthru
      _
    // Predicated region
    $region14: #{tpu_custom_call.1} parent=1 // pred_check
      _
    $region15: #{tpu_custom_call.1} parent=1 // pred_check_branch
      %24 = sbr.rel (0) target = $region17
    $region16: #{tpu_custom_call.1} parent=1 // pred_region
      _
    $region17: #{tpu_custom_call.1} parent=1 // pred_fallthru
      _
    // Predicated region
    $region18: #{tpu_custom_call.1} parent=1 // pred_check
      _
    $region19: #{tpu_custom_call.1} parent=1 // pred_check_branch
      %26 = sbr.rel (0) target = $region21
    $region20: #{tpu_custom_call.1} parent=1 // pred_region
      _
    $region21: #{tpu_custom_call.1} parent=1 // pred_fallthru
      _
    // Predicated region
    $region22: #{tpu_custom_call.1} parent=1 // pred_check
      _
    $region23: #{tpu_custom_call.1} parent=1 // pred_check_branch
      %28 = sbr.rel (0) target = $region25
    $region24: #{tpu_custom_call.1} parent=1 // pred_region
      _
    $region25: #{tpu_custom_call.1} parent=1 // pred_fallthru
      _
    // Predicated region
    $region26: #{tpu_custom_call.1} parent=1 // pred_check
      _
    $region27: #{tpu_custom_call.1} parent=1 // pred_check_branch
      %30 = sbr.rel (0) target = $region29
    $region28: #{tpu_custom_call.1} parent=1 // pred_region
      _
    $region29: #{tpu_custom_call.1} parent=1 // pred_fallthru
      _
    // Predicated region
    $region30: #{tpu_custom_call.1} parent=1 // pred_check
      _
    $region31: #{tpu_custom_call.1} parent=1 // pred_check_branch
      %32 = sbr.rel (0) target = $region33
    $region32: #{tpu_custom_call.1} parent=1 // pred_region
      _
    $region33: #{tpu_custom_call.1} parent=1 // pred_fallthru
      _
    %v34 = vld [vmem:[%s1] sm:$0xff]
    %vm35 = vcmp.gt.f32.partialorder %v34, 0.0
    %v36 = vmul.f32 %v34, 0.2
    %v37 = vsel %vm35, %v34, %v36
    %v38 = vld [vmem:[%s2] sm:$0x1]
    %v40 = vlaneseq
    %v41 = vshrl.u32 %v40, 7
    %v42 = vsub.s32 0, %v41
    %v43 = vrot.slane %v38, %v42
    %v45 = vadd.f32 %v37, %v43
    %vm46 = vcmask 64512
    %v47 = vsel %vm46, %v45, -inf
    %48 = vmax.xlane.f32.xlu0 %v47
    %v49 = vpop.xlane.xlu0 %48
    %v50 = vsub.f32 %v45, %v49
    %v51 = vmul.f32 %v50, 1.442695
    %v52 = vpow.pop %v51
    %v53 = vsel %vm46, %v52, 0.0
    %54 = vadd.xlane.f32.xlu0 %v53
    %v55 = vpop.xlane.xlu0 %54
    %v56 = vrcp.pop %v55
    %v57 = vmul.f32 1.0, %v56
    %v58 = vmul.f32 %v52, %v57
    %59 = vst.msk [vmem:[#allocation4] sm:$0xff] %vm46, %v58
    %v60 = vld [vmem:[%s5] sm:$0xff]
    %v61 = vld [vmem:[%s4] sm:$0xff]
    %v62 = vld [vmem:[%s2] sm:$0x1]
    %v64 = vlaneseq
    %v65 = vshrl.u32 %v64, 7
    %v66 = vsub.s32 0, %v65
    %v67 = vrot.slane %v62, %v66
    %vm69 = vcmask 261120
    %v71 = vsel %vm69, %v60, 0
    %v74 = vsel %vm69, %v61, 0
    %76 = vmatprep.subr.mxu0 0.0
    %77 = vmatpush1.xpose.msra.mxu0 0.0
    %78 = vmatprep.subr.mxu0 0.0
    %79 = vmatpush1.xpose.msra.mxu0 0.0
    %80 = vmatprep.subr.mxu0 0.0
    %81 = vmatpush1.xpose.msra.mxu0 0.0
    %82 = vmatprep.subr.mxu0 0.0
    %83 = vmatpush1.xpose.msra.mxu0 0.0
    %84 = vmatprep.subr.mxu0 0.0
    %85 = vmatpush1.xpose.msra.mxu0 0.0
    %86 = vmatprep.subr.mxu0 0.0
    %87 = vmatpush1.xpose.msra.mxu0 0.0
    %88 = vmatprep.subr.mxu0 0.0
    %89 = vmatpush1.xpose.msra.mxu0 0.0
    %90 = vmatprep.subr.mxu0 0.0
    %91 = vmatpush1.xpose.msra.mxu0 0.0
    %92 = vmatprep.subr.mxu0 0.0
    %93 = vmatpush1.xpose.msra.mxu0 0.0
    %94 = vmatprep.subr.mxu0 0.0
    %95 = vmatpush1.xpose.msra.mxu0 0.0
    %96 = vmatprep.subr.mxu0 0.0
    %97 = vmatpush1.xpose.msra.mxu0 0.0
    %98 = vmatprep.subr.mxu0 0.0
    %99 = vmatpush1.xpose.msra.mxu0 0.0
    %100 = vmatprep.subr.mxu0 0.0
    %101 = vmatpush1.xpose.msra.mxu0 0.0
    %102 = vmatprep.subr.mxu0 0.0
    %103 = vmatpush1.xpose.msra.mxu0 0.0
    %104 = vmatprep.subr.mxu0 0.0
    %105 = vmatpush1.xpose.msra.mxu0 0.0
    %106 = vmatprep.subr.mxu0 0.0
    %107 = vmatpush1.xpose.msra.mxu0 %v74
    %108 = vmatprep.subr.mxu0 0.0
    %109 = vmatpush2.xpose.msra.mxu0 0.0
    %110 = vmatprep.subr.mxu0 0.0
    %111 = vmatpush2.xpose.msra.mxu0 0.0
    %112 = vmatprep.subr.mxu0 0.0
    %113 = vmatpush2.xpose.msra.mxu0 0.0
    %114 = vmatprep.subr.mxu0 0.0
    %115 = vmatpush2.xpose.msra.mxu0 0.0
    %116 = vmatprep.subr.mxu0 0.0
    %117 = vmatpush2.xpose.msra.mxu0 0.0
    %118 = vmatprep.subr.mxu0 0.0
    %119 = vmatpush2.xpose.msra.mxu0 0.0
    %120 = vmatprep.subr.mxu0 0.0
    %121 = vmatpush2.xpose.msra.mxu0 0.0
    %122 = vmatprep.subr.mxu0 0.0
    %123 = vmatpush2.xpose.msra.mxu0 0.0
    %124 = vmatprep.subr.mxu0 0.0
    %125 = vmatpush2.xpose.msra.mxu0 0.0
    %126 = vmatprep.subr.mxu0 0.0
    %127 = vmatpush2.xpose.msra.mxu0 0.0
    %128 = vmatprep.subr.mxu0 0.0
    %129 = vmatpush2.xpose.msra.mxu0 0.0
    %130 = vmatprep.subr.mxu0 0.0
    %131 = vmatpush2.xpose.msra.mxu0 0.0
    %132 = vmatprep.subr.mxu0 0.0
    %133 = vmatpush2.xpose.msra.mxu0 0.0
    %134 = vmatprep.subr.mxu0 0.0
    %135 = vmatpush2.xpose.msra.mxu0 0.0
    %136 = vmatprep.subr.mxu0 0.0
    %137 = vmatpush2.xpose.msra.mxu0 0.0
    %138 = vmatprep.subr.mxu0 0.0
    %139 = vmatpush2.xpose.msra.mxu0 0.0
    %140 = vmatprep.mubr.f32.mxu0 0.0
    %141 = vmatmul.mubr.f32.gmra.mxu0 %v71
    %v142 = vpop.f32.mrf.mxu0
    %v143 = vadd.f32 %v67, %v142
    %v144 = vpop.f32.mrf.mxu0
    %145 = vdwg.mxu0
    %v146 = vsel %vm46, %v143, -inf
    %147 = vmax.xlane.f32.xlu0 %v146
    %v148 = vpop.xlane.xlu0 %147
    %v149 = vsub.f32 %v143, %v148
    %v150 = vmul.f32 %v149, 1.442695
    %v151 = vpow.pop %v150
    %v152 = vsel %vm46, %v151, 0.0
    %153 = vadd.xlane.f32.xlu0 %v152
    %v154 = vpop.xlane.xlu0 %153
    %v155 = vrcp.pop %v154
    %v156 = vmul.f32 %v151, %v155
    %v157 = vpack.c.bf16 %v58, %v58
    %v158 = vpack.c.bf16 %v156, %v156
    %v160 = vrot.slane %v158, 4
    %vm161 = vcmask 1043456
    %v164 = vsel %vm161, %v157, %v160
    %v165 = vld [vmem:[%s3] sm:$0xf]
    %v166 = vsel %vm46, %v164, 0
    %v169 = vsel %vm161, %v165, 0
    %171 = vmatprep.subr.bf16.mxu0 0
    %172 = vmatpush1.bf16.msra.mxu0 0
    %173 = vmatprep.subr.bf16.mxu0 0
    %174 = vmatpush1.bf16.msra.mxu0 0
    %175 = vmatprep.subr.bf16.mxu0 0
    %176 = vmatpush1.bf16.msra.mxu0 0
    %177 = vmatprep.subr.bf16.mxu0 0
    %178 = vmatpush1.bf16.msra.mxu0 0
    %179 = vmatprep.subr.bf16.mxu0 0
    %180 = vmatpush1.bf16.msra.mxu0 0
    %181 = vmatprep.subr.bf16.mxu0 0
    %182 = vmatpush1.bf16.msra.mxu0 0
    %183 = vmatprep.subr.bf16.mxu0 0
    %184 = vmatpush1.bf16.msra.mxu0 0
    %185 = vmatprep.subr.bf16.mxu0 0
    %186 = vmatpush1.bf16.msra.mxu0 %v169
    %187 = vmatprep.subr.bf16.mxu0 0
    %188 = vmatpush2.bf16.msra.mxu0 0
    %189 = vmatprep.subr.bf16.mxu0 0
    %190 = vmatpush2.bf16.msra.mxu0 0
    %191 = vmatprep.subr.bf16.mxu0 0
    %192 = vmatpush2.bf16.msra.mxu0 0
    %193 = vmatprep.subr.bf16.mxu0 0
    %194 = vmatpush2.bf16.msra.mxu0 0
    %195 = vmatprep.subr.bf16.mxu0 0
    %196 = vmatpush2.bf16.msra.mxu0 0
    %197 = vmatprep.subr.bf16.mxu0 0
    %198 = vmatpush2.bf16.msra.mxu0 0
    %199 = vmatprep.subr.bf16.mxu0 0
    %200 = vmatpush2.bf16.msra.mxu0 0
    %201 = vmatprep.subr.bf16.mxu0 0
    %202 = vmatpush2.bf16.msra.mxu0 0
    %203 = vmatprep.mubr.bf16.mxu0 0
    %204 = vmatmul.mubr.bf16.gmra.mxu0 %v166
    %v205 = vpop.f32.mrf.mxu0
    %v206 = vadd.f32 0.0, %v205
    %v207 = vpop.f32.mrf.mxu0
    %v208 = vpop.f32.mrf.mxu0
    %v209 = vadd.f32 0.0, %v208
    %v210 = vpop.f32.mrf.mxu0
    %211 = vdwg.mxu0
    %v212 = vld [vmem:[%s0] sm:$0xf]
    %v213 = vld [vmem:[%s0 + $0x4] sm:$0xf]
    %v214 = vld [vmem:[%s0 + $0x8] sm:$0xf]
    %v215 = vld [vmem:[%s0 + $0xc] sm:$0xf]
    %v216 = vld [vmem:[%s0 + $0x10] sm:$0xf]
    %v217 = vld [vmem:[%s0 + $0x14] sm:$0xf]
    %v218 = vld [vmem:[%s0 + $0x18] sm:$0xf]
    %v219 = vld [vmem:[%s0 + $0x1c] sm:$0xf]
    %v220 = vld [vmem:[%s0 + $0x20] sm:$0xf]
    %v221 = vld [vmem:[%s0 + $0x24] sm:$0xf]
    %v222 = vld [vmem:[%s0 + $0x28] sm:$0xf]
    %v223 = vld [vmem:[%s0 + $0x2c] sm:$0xf]
    %v224 = vld [vmem:[%s0 + $0x30] sm:$0xf]
    %v225 = vld [vmem:[%s0 + $0x34] sm:$0xf]
    %v226 = vld [vmem:[%s0 + $0x38] sm:$0xf]
    %v227 = vld [vmem:[%s0 + $0x3c] sm:$0xf]
    %v228 = vunpack.c.l.bf16 %v212
    %v229 = vunpack.c.l.bf16 %v213
    %v230 = vunpack.c.l.bf16 %v214
    %v231 = vunpack.c.l.bf16 %v215
    %v232 = vunpack.c.l.bf16 %v216
    %v233 = vunpack.c.l.bf16 %v217
    %v234 = vunpack.c.l.bf16 %v218
    %v235 = vunpack.c.l.bf16 %v219
    %v236 = vunpack.c.l.bf16 %v220
    %v237 = vunpack.c.l.bf16 %v221
    %v238 = vunpack.c.l.bf16 %v222
    %v239 = vunpack.c.l.bf16 %v223
    %v240 = vunpack.c.l.bf16 %v224
    %v241 = vunpack.c.l.bf16 %v225
    %v242 = vunpack.c.l.bf16 %v226
    %v243 = vunpack.c.l.bf16 %v227
    %v245 = vcombine.high %v58, %v58
    %v247 = vunpack.c.l.s4 1966171168
    %v248 = vunpack.c.0.s8 %v247
    %v249 = vlaneseq
    %v250 = vshrl.u32 %v249, 7
    %v251 = vsub.s32 %v248, %v250
    %v252 = vrot.slane %v58, %v251
    %v254 = vunpack.c.l.s4 1966171168
    %v255 = vunpack.c.0.s8 %v254
    %v256 = vlaneseq
    %v257 = vshrl.u32 %v256, 7
    %v258 = vsub.s32 %v255, %v257
    %v259 = vrot.slane %v245, %v258
    %v260 = vcombine.high %v252, %v252
    %v261 = vcombine.high %v259, %v259
    %v263 = vunpack.c.l.s4 1966171168
    %v264 = vunpack.c.0.s8 %v263
    %v265 = vlaneseq
    %v266 = vshrl.u32 %v265, 7
    %v267 = vsub.s32 %v264, %v266
    %v268 = vrot.slane %v252, %v267
    %v270 = vunpack.c.l.s4 1966171168
    %v271 = vunpack.c.0.s8 %v270
    %v272 = vlaneseq
    %v273 = vshrl.u32 %v272, 7
    %v274 = vsub.s32 %v271, %v273
    %v275 = vrot.slane %v259, %v274
    %v277 = vunpack.c.l.s4 1966171168
    %v278 = vunpack.c.0.s8 %v277
    %v279 = vlaneseq
    %v280 = vshrl.u32 %v279, 7
    %v281 = vsub.s32 %v278, %v280
    %v282 = vrot.slane %v260, %v281
    %v284 = vunpack.c.l.s4 1966171168
    %v285 = vunpack.c.0.s8 %v284
    %v286 = vlaneseq
    %v287 = vshrl.u32 %v286, 7
    %v288 = vsub.s32 %v285, %v287
    %v289 = vrot.slane %v261, %v288
    %v290 = vcombine.high %v268, %v268
    %v291 = vcombine.high %v275, %v275
    %v292 = vcombine.high %v282, %v282
    %v293 = vcombine.high %v289, %v289
    %v294 = vlaneseq
    %v295 = vshrl.u32 %v294, 7
    %v296 = vsub.s32 0, %v295
    %v297 = vrot.slane %v268, %v296
    %v298 = vlaneseq
    %v299 = vshrl.u32 %v298, 7
    %v300 = vsub.s32 0, %v299
    %v301 = vrot.slane %v282, %v300
    %v302 = vlaneseq
    %v303 = vshrl.u32 %v302, 7
    %v304 = vsub.s32 0, %v303
    %v305 = vrot.slane %v290, %v304
    %v306 = vlaneseq
    %v307 = vshrl.u32 %v306, 7
    %v308 = vsub.s32 0, %v307
    %v309 = vrot.slane %v292, %v308
    %v310 = vlaneseq
    %v311 = vshrl.u32 %v310, 7
    %v312 = vsub.s32 0, %v311
    %v313 = vrot.slane %v275, %v312
    %v314 = vlaneseq
    %v315 = vshrl.u32 %v314, 7
    %v316 = vsub.s32 0, %v315
    %v317 = vrot.slane %v289, %v316
    %v318 = vlaneseq
    %v319 = vshrl.u32 %v318, 7
    %v320 = vsub.s32 0, %v319
    %v321 = vrot.slane %v291, %v320
    %v322 = vlaneseq
    %v323 = vshrl.u32 %v322, 7
    %v324 = vsub.s32 0, %v323
    %v325 = vrot.slane %v293, %v324
    %v334 = vmul.f32 %v228, %v297
    %v335 = vmul.f32 %v229, %v297
    %v336 = vmul.f32 %v230, %v301
    %v337 = vmul.f32 %v231, %v301
    %v338 = vmul.f32 %v232, %v305
    %v339 = vmul.f32 %v233, %v305
    %v340 = vmul.f32 %v234, %v309
    %v341 = vmul.f32 %v235, %v309
    %v342 = vmul.f32 %v236, %v313
    %v343 = vmul.f32 %v237, %v313
    %v344 = vmul.f32 %v238, %v317
    %v345 = vmul.f32 %v239, %v317
    %v346 = vmul.f32 %v240, %v321
    %v347 = vmul.f32 %v241, %v321
    %v348 = vmul.f32 %v242, %v325
    %v349 = vmul.f32 %v243, %v325
    %v350 = vsel %vm46, %v334, 0.0
    %351 = vadd.xlane.f32.xlu0 %v350
    %v352 = vpop.xlane.xlu0 %351
    %v353 = vsel %vm46, %v335, 0.0
    %354 = vadd.xlane.f32.xlu0 %v353
    %v355 = vpop.xlane.xlu0 %354
    %v356 = vsel %vm46, %v336, 0.0
    %357 = vadd.xlane.f32.xlu0 %v356
    %v358 = vpop.xlane.xlu0 %357
    %v359 = vsel %vm46, %v337, 0.0
    %360 = vadd.xlane.f32.xlu0 %v359
    %v361 = vpop.xlane.xlu0 %360
    %v362 = vsel %vm46, %v338, 0.0
    %363 = vadd.xlane.f32.xlu0 %v362
    %v364 = vpop.xlane.xlu0 %363
    %v365 = vsel %vm46, %v339, 0.0
    %366 = vadd.xlane.f32.xlu0 %v365
    %v367 = vpop.xlane.xlu0 %366
    %v368 = vsel %vm46, %v340, 0.0
    %369 = vadd.xlane.f32.xlu0 %v368
    %v370 = vpop.xlane.xlu0 %369
    %v371 = vsel %vm46, %v341, 0.0
    %372 = vadd.xlane.f32.xlu0 %v371
    %v373 = vpop.xlane.xlu0 %372
    %v374 = vsel %vm46, %v342, 0.0
    %375 = vadd.xlane.f32.xlu0 %v374
    %v376 = vpop.xlane.xlu0 %375
    %v377 = vsel %vm46, %v343, 0.0
    %378 = vadd.xlane.f32.xlu0 %v377
    %v379 = vpop.xlane.xlu0 %378
    %v380 = vsel %vm46, %v344, 0.0
    %381 = vadd.xlane.f32.xlu0 %v380
    %v382 = vpop.xlane.xlu0 %381
    %v383 = vsel %vm46, %v345, 0.0
    %384 = vadd.xlane.f32.xlu0 %v383
    %v385 = vpop.xlane.xlu0 %384
    %v386 = vsel %vm46, %v346, 0.0
    %387 = vadd.xlane.f32.xlu0 %v386
    %v388 = vpop.xlane.xlu0 %387
    %v389 = vsel %vm46, %v347, 0.0
    %390 = vadd.xlane.f32.xlu0 %v389
    %v391 = vpop.xlane.xlu0 %390
    %v392 = vsel %vm46, %v348, 0.0
    %393 = vadd.xlane.f32.xlu0 %v392
    %v394 = vpop.xlane.xlu0 %393
    %v395 = vsel %vm46, %v349, 0.0
    %396 = vadd.xlane.f32.xlu0 %v395
    %v397 = vpop.xlane.xlu0 %396
    %v398 = vld [vmem:[%s6] sm:$0xff]
    %v399 = vld [vmem:[%s6 + $0x8] sm:$0xff]
    %v400 = vld [vmem:[%s7] sm:$0x1]
    %v402 = vlaneseq
    %v403 = vshrl.u32 %v402, 7
    %v404 = vsub.s32 0, %v403
    %v405 = vrot.slane %v400, %v404
    %v423 = vlaneseq
    %v424 = vand.u32 %v423, 127
    %v425 = vlaneseq
    %v426 = vshrl.u32 %v425, 7
    %v427 = vsub.s32 %v424, %v426
    %v428 = vrot.slane %v352, %v427
    %v429 = vadd.s32 %v424, 4294967288
    %v430 = vlaneseq
    %v431 = vshrl.u32 %v430, 7
    %v432 = vsub.s32 %v429, %v431
    %v433 = vrot.slane %v355, %v432
    %vm434 = vcmask 130112
    %v435 = vsel %vm434, %v433, %v428
    %v436 = vlaneseq
    %v437 = vshrl.u32 %v436, 7
    %v438 = vsub.s32 %v424, %v437
    %v439 = vrot.slane %v358, %v438
    %v440 = vlaneseq
    %v441 = vshrl.u32 %v440, 7
    %v442 = vsub.s32 %v429, %v441
    %v443 = vrot.slane %v361, %v442
    %v444 = vsel %vm434, %v443, %v439
    %v445 = vlaneseq
    %v446 = vshrl.u32 %v445, 7
    %v447 = vsub.s32 %v424, %v446
    %v448 = vrot.slane %v364, %v447
    %v449 = vlaneseq
    %v450 = vshrl.u32 %v449, 7
    %v451 = vsub.s32 %v429, %v450
    %v452 = vrot.slane %v367, %v451
    %v453 = vsel %vm434, %v452, %v448
    %v454 = vlaneseq
    %v455 = vshrl.u32 %v454, 7
    %v456 = vsub.s32 %v424, %v455
    %v457 = vrot.slane %v370, %v456
    %v458 = vlaneseq
    %v459 = vshrl.u32 %v458, 7
    %v460 = vsub.s32 %v429, %v459
    %v461 = vrot.slane %v373, %v460
    %v462 = vsel %vm434, %v461, %v457
    %v463 = vlaneseq
    %v464 = vshrl.u32 %v463, 7
    %v465 = vsub.s32 %v424, %v464
    %v466 = vrot.slane %v376, %v465
    %v467 = vlaneseq
    %v468 = vshrl.u32 %v467, 7
    %v469 = vsub.s32 %v429, %v468
    %v470 = vrot.slane %v379, %v469
    %v471 = vsel %vm434, %v470, %v466
    %v472 = vlaneseq
    %v473 = vshrl.u32 %v472, 7
    %v474 = vsub.s32 %v424, %v473
    %v475 = vrot.slane %v382, %v474
    %v476 = vlaneseq
    %v477 = vshrl.u32 %v476, 7
    %v478 = vsub.s32 %v429, %v477
    %v479 = vrot.slane %v385, %v478
    %v480 = vsel %vm434, %v479, %v475
    %v481 = vlaneseq
    %v482 = vshrl.u32 %v481, 7
    %v483 = vsub.s32 %v424, %v482
    %v484 = vrot.slane %v388, %v483
    %v485 = vlaneseq
    %v486 = vshrl.u32 %v485, 7
    %v487 = vsub.s32 %v429, %v486
    %v488 = vrot.slane %v391, %v487
    %v489 = vsel %vm434, %v488, %v484
    %v490 = vlaneseq
    %v491 = vshrl.u32 %v490, 7
    %v492 = vsub.s32 %v424, %v491
    %v493 = vrot.slane %v394, %v492
    %v494 = vlaneseq
    %v495 = vshrl.u32 %v494, 7
    %v496 = vsub.s32 %v429, %v495
    %v497 = vrot.slane %v397, %v496
    %v498 = vsel %vm434, %v497, %v493
    %vm499 = vcmask 1041409
    %v500 = vsel %vm499, %v444, %v435
    %vm501 = vcmask 1042434
    %v502 = vsel %vm501, %v453, %v500
    %vm503 = vcmask 1043459
    %v504 = vsel %vm503, %v462, %v502
    %vm505 = vcmask 1044484
    %v506 = vsel %vm505, %v471, %v504
    %vm507 = vcmask 1045509
    %v508 = vsel %vm507, %v480, %v506
    %vm509 = vcmask 1046534
    %v510 = vsel %vm509, %v489, %v508
    %vm511 = vcmask 1047559
    %v512 = vsel %vm511, %v498, %v510
    %vm513 = vcmask 130048
    %v514 = vsel %vm513, %v512, 0
    %516 = vmatprep.subr.mxu0 0.0
    %517 = vmatpush1.msra.mxu0 0.0
    %518 = vmatprep.subr.mxu0 0.0
    %519 = vmatpush1.msra.mxu0 0.0
    %520 = vmatprep.subr.mxu0 0.0
    %521 = vmatpush1.msra.mxu0 0.0
    %522 = vmatprep.subr.mxu0 0.0
    %523 = vmatpush1.msra.mxu0 0.0
    %524 = vmatprep.subr.mxu0 0.0
    %525 = vmatpush1.msra.mxu0 0.0
    %526 = vmatprep.subr.mxu0 0.0
    %527 = vmatpush1.msra.mxu0 0.0
    %528 = vmatprep.subr.mxu0 0.0
    %529 = vmatpush1.msra.mxu0 0.0
    %530 = vmatprep.subr.mxu0 0.0
    %531 = vmatpush1.msra.mxu0 0.0
    %532 = vmatprep.subr.mxu0 0.0
    %533 = vmatpush1.msra.mxu0 0.0
    %534 = vmatprep.subr.mxu0 0.0
    %535 = vmatpush1.msra.mxu0 0.0
    %536 = vmatprep.subr.mxu0 0.0
    %537 = vmatpush1.msra.mxu0 0.0
    %538 = vmatprep.subr.mxu0 0.0
    %539 = vmatpush1.msra.mxu0 0.0
    %540 = vmatprep.subr.mxu0 0.0
    %541 = vmatpush1.msra.mxu0 0.0
    %542 = vmatprep.subr.mxu0 0.0
    %543 = vmatpush1.msra.mxu0 0.0
    %544 = vmatprep.subr.mxu0 0.0
    %545 = vmatpush1.msra.mxu0 %v399
    %546 = vmatprep.subr.mxu0 0.0
    %547 = vmatpush1.msra.mxu0 %v398
    %548 = vmatprep.subr.mxu0 0.0
    %549 = vmatpush2.msra.mxu0 0.0
    %550 = vmatprep.subr.mxu0 0.0
    %551 = vmatpush2.msra.mxu0 0.0
    %552 = vmatprep.subr.mxu0 0.0
    %553 = vmatpush2.msra.mxu0 0.0
    %554 = vmatprep.subr.mxu0 0.0
    %555 = vmatpush2.msra.mxu0 0.0
    %556 = vmatprep.subr.mxu0 0.0
    %557 = vmatpush2.msra.mxu0 0.0
    %558 = vmatprep.subr.mxu0 0.0
    %559 = vmatpush2.msra.mxu0 0.0
    %560 = vmatprep.subr.mxu0 0.0
    %561 = vmatpush2.msra.mxu0 0.0
    %562 = vmatprep.subr.mxu0 0.0
    %563 = vmatpush2.msra.mxu0 0.0
    %564 = vmatprep.subr.mxu0 0.0
    %565 = vmatpush2.msra.mxu0 0.0
    %566 = vmatprep.subr.mxu0 0.0
    %567 = vmatpush2.msra.mxu0 0.0
    %568 = vmatprep.subr.mxu0 0.0
    %569 = vmatpush2.msra.mxu0 0.0
    %570 = vmatprep.subr.mxu0 0.0
    %571 = vmatpush2.msra.mxu0 0.0
    %572 = vmatprep.subr.mxu0 0.0
    %573 = vmatpush2.msra.mxu0 0.0
    %574 = vmatprep.subr.mxu0 0.0
    %575 = vmatpush2.msra.mxu0 0.0
    %576 = vmatprep.subr.mxu0 0.0
    %577 = vmatpush2.msra.mxu0 0.0
    %578 = vmatprep.subr.mxu0 0.0
    %579 = vmatpush2.msra.mxu0 0.0
    %580 = vmatprep.mubr.f32.mxu0 0.0
    %581 = vmatmul.mubr.f32.gmra.mxu0 %v514
    %v582 = vpop.f32.mrf.mxu0
    %v583 = vadd.f32 %v405, %v582
    %v584 = vpop.f32.mrf.mxu0
    %585 = vdwg.mxu0
    %v586 = vmul.f32 %v206, %v209
    %v587 = vadd.f32 %v586, %v583
    %588 = vst.msk [vmem:[#allocation2] sm:$0xff] %vm69, %v587
    // Predicated region
    $region34: #{tpu_custom_call.1} parent=1 // pred_check
      _
    $region35: #{tpu_custom_call.1} parent=1 // pred_check_branch
      %590 = sbr.rel (0) target = $region37
    $region36: #{tpu_custom_call.1} parent=1 // pred_region
      %s592 = ssub.s32 128, 128
      %593 = vsyncadd [#allocation3], %s592
      %s595 = sshll.u32 [#allocation2], 4
      %s596 = int_to_ptr.vmem [resolvable:$true] %s595
      %598 = dma.vmem_to_hbm [thread:$0]  %s596, 128, %s8, [#allocation3]
    $region37: #{tpu_custom_call.1} parent=1 // pred_fallthru
      _
    // Predicated region
    $region38: #{tpu_custom_call.1} parent=1 // pred_check
      _
    $region39: #{tpu_custom_call.1} parent=1 // pred_check_branch
      %600 = sbr.rel (0) target = $region41
    $region40: #{tpu_custom_call.1} parent=1 // pred_region
      %s602 = ssub.s32 128, 128
      %603 = vsyncadd [#allocation5], %s602
      %s605 = sshll.u32 [#allocation4], 4
      %s606 = int_to_ptr.vmem [resolvable:$true] %s605
      %608 = dma.vmem_to_hbm [thread:$0]  %s606, 128, %s9, [#allocation5]
    $region41: #{tpu_custom_call.1} parent=1 // pred_fallthru
      _
    // Predicated region
    $region42: #{tpu_custom_call.1} parent=1 // pred_check
      _
    $region43: #{tpu_custom_call.1} parent=1 // pred_check_branch
      %610 = sbr.rel (0) target = $region45
    $region44: #{tpu_custom_call.1} parent=1 // pred_region
      %611 = dma.done [#allocation3], 128
    $region45: #{tpu_custom_call.1} parent=1 // pred_fallthru
      _
    // Predicated region
    $region46: #{tpu_custom_call.1} parent=1 // pred_check
      _
    $region47: #{tpu_custom_call.1} parent=1 // pred_check_branch
      %613 = sbr.rel (0) target = $region49
    $region48: #{tpu_custom_call.1} parent=1 // pred_region
      %614 = dma.done [#allocation5], 128
    $region49: #{tpu_custom_call.1} parent=1 // pred_fallthru
      _
    %615 = vsyncpa [#allocation3], 1
    %616 = vsyncpa [#allocation5], 1

</llo_original>
